<compile_context>
chip_gen: v7x
topology: tpu7x:2x2x1
jax: 0.10.0
libtpu: 0.0.40
codegen_flags: <defaults>
</compile_context>

<pallas_src>
import math

import jax
import jax.numpy as jnp
from jax.experimental import pallas as pl
from jax.experimental.pallas import tpu as pltpu

_LANE = 128
_TILE_LANES = 512        # lane width of tiled views (multiple of 128, >=512 for HBM roofline)
_MAX_TILE_ROWS = 1024    # rows per grid step -> 1024 * 512 * 4B = 2 MiB per block
_FUSED_MAX_ELEMS = 4096  # per-tensor element cap for the single-block fused path


def _round_up(x, m):
    return ((x + m - 1) // m) * m


def _pad_to_single_row(flat):
    """Pad a flat vector to a multiple of 128 and view it as (1, P): lane-dense."""
    n = int(flat.shape[0])
    padded = _round_up(max(n, 1), _LANE)
    if padded != n:
        flat = jnp.pad(flat, (0, padded - n))
    return flat.reshape(1, padded)


def _tiled_view(flat):
    """Pad a flat vector so it reshapes to (rows_p, 512) with rows_p % tile_rows == 0."""
    n = int(flat.shape[0])
    rows = -(-max(n, 1) // _TILE_LANES)
    tile_rows = min(_MAX_TILE_ROWS, _round_up(rows, 8))
    rows_p = _round_up(rows, tile_rows)
    padded = rows_p * _TILE_LANES
    if padded != n:
        flat = jnp.pad(flat, (0, padded - n))
    return flat.reshape(rows_p, _TILE_LANES), tile_rows


# --------------------------------------------------------------------------- kernels
def _fused_kernel(scal_ref, conv_ref, lin_ref, conv_o_ref, lin_o_ref, emb_o_ref):
    """Fused toy-size body. scal_ref: f32[5] SMEM = [conv_w, conv_b, lin_w, lin_b, emb_w]."""
    # Conv1d(1,1,1): y = x * W + b  (pure VPU affine).
    conv_o_ref[...] = (conv_ref[...] * scal_ref[0] + scal_ref[1]).astype(conv_o_ref.dtype)
    # Linear(1,1): same affine over the (flattened) feature axis.
    lin_o_ref[...] = (lin_ref[...] * scal_ref[2] + scal_ref[3]).astype(lin_o_ref.dtype)
    # Embedding(1,1): vocab size 1 -> every valid index selects row 0; pure broadcast + store.
    emb_o_ref[...] = jnp.full(emb_o_ref.shape, scal_ref[4], emb_o_ref.dtype)


def _affine_kernel(scal_ref, x_ref, o_ref):
    """Tiled elementwise affine: o = x * scal[0] + scal[1]."""
    o_ref[...] = (x_ref[...] * scal_ref[0] + scal_ref[1]).astype(o_ref.dtype)


def _fill_kernel(scal_ref, o_ref):
    """Tiled scalar broadcast (Embedding with vocab == 1)."""
    o_ref[...] = jnp.full(o_ref.shape, scal_ref[0], o_ref.dtype)


# --------------------------------------------------------------------------- call paths
def _fused_small(scalars, conv_flat, lin_flat, emb_elems, emb_dtype):
    conv2d = _pad_to_single_row(conv_flat)
    lin2d = _pad_to_single_row(lin_flat)
    emb_cols = _round_up(max(emb_elems, 1), _LANE)

    conv_o, lin_o, emb_o = pl.pallas_call(
        _fused_kernel,
        out_shape=(
            jax.ShapeDtypeStruct(conv2d.shape, conv_flat.dtype),
            jax.ShapeDtypeStruct(lin2d.shape, lin_flat.dtype),
            jax.ShapeDtypeStruct((1, emb_cols), emb_dtype),
        ),
        in_specs=[
            pl.BlockSpec(memory_space=pltpu.MemorySpace.SMEM),  # packed scalars
            pl.BlockSpec(memory_space=pltpu.MemorySpace.VMEM),  # conv view
            pl.BlockSpec(memory_space=pltpu.MemorySpace.VMEM),  # linear view
        ],
        out_specs=(
            pl.BlockSpec(memory_space=pltpu.MemorySpace.VMEM),
            pl.BlockSpec(memory_space=pltpu.MemorySpace.VMEM),
            pl.BlockSpec(memory_space=pltpu.MemorySpace.VMEM),
        ),
    )(scalars, conv2d, lin2d)

    return (
        conv_o.reshape(-1)[: conv_flat.shape[0]],
        lin_o.reshape(-1)[: lin_flat.shape[0]],
        emb_o.reshape(-1)[:emb_elems],
    )


def _affine_tiled(x_flat, wb):
    """HBM-bound elementwise affine with a 1-D 'parallel' grid over lane-dense blocks."""
    x2d, tile_rows = _tiled_view(x_flat)
    rows_p, lanes = x2d.shape
    grid = rows_p // tile_rows
    out2d = pl.pallas_call(
        _affine_kernel,
        out_shape=jax.ShapeDtypeStruct((rows_p, lanes), x_flat.dtype),
        grid=(grid,),
        in_specs=[
            pl.BlockSpec(memory_space=pltpu.MemorySpace.SMEM),        # [w, b]
            pl.BlockSpec((tile_rows, lanes), lambda i: (i, 0)),
        ],
        out_specs=pl.BlockSpec((tile_rows, lanes), lambda i: (i, 0)),
        compiler_params=pltpu.CompilerParams(dimension_semantics=("parallel",)),
    )(wb, x2d)
    return out2d.reshape(-1)[: x_flat.shape[0]]


def _fill_tiled(num_elems, w, dtype):
    rows = -(-max(num_elems, 1) // _TILE_LANES)
    tile_rows = min(_MAX_TILE_ROWS, _round_up(rows, 8))
    rows_p = _round_up(rows, tile_rows)
    grid = rows_p // tile_rows
    out2d = pl.pallas_call(
        _fill_kernel,
        out_shape=jax.ShapeDtypeStruct((rows_p, _TILE_LANES), dtype),
        grid=(grid,),
        in_specs=[pl.BlockSpec(memory_space=pltpu.MemorySpace.SMEM)],  # [emb_w]
        out_specs=pl.BlockSpec((tile_rows, _TILE_LANES), lambda i: (i, 0)),
        compiler_params=pltpu.CompilerParams(dimension_semantics=("parallel",)),
    )(w)
    return out2d.reshape(-1)[:num_elems]


# --------------------------------------------------------------------------- public API
def pack_params(params):
    """Pack the five scalar parameters ONCE at init time (off the per-forward hot path)."""
    conv_w = params["conv_w"].reshape(-1).astype(jnp.float32)  # (1,1,1) -> (1,)
    conv_b = params["conv_b"].reshape(-1).astype(jnp.float32)  # (1,)
    lin_w = params["lin_w"].reshape(-1).astype(jnp.float32)    # (1,1)   -> (1,)
    lin_b = params["lin_b"].reshape(-1).astype(jnp.float32)    # (1,)
    emb_w = params["emb_w"].reshape(-1).astype(jnp.float32)    # (1,1)   -> (1,)
    return {
        "all": jnp.concatenate([conv_w, conv_b, lin_w, lin_b, emb_w]),
        "conv": jnp.concatenate([conv_w, conv_b]),
        "lin": jnp.concatenate([lin_w, lin_b]),
        "emb": emb_w,
        "emb_dtype": params["emb_w"].dtype,
    }


def model_forward(packed, conv_input, linear_input, embedding_input):
    """Forward pass of ModelForIONamingTest.

    Returns [conv_out, {"linear": lin_out, "embedding": emb_out}].
    """
    conv_flat = conv_input.reshape(-1)
    lin_flat = linear_input.reshape(-1)
    emb_elems = int(math.prod(embedding_input.shape))  # embedding_dim == 1

    small = max(int(conv_flat.shape[0]), int(lin_flat.shape[0]), emb_elems) <= _FUSED_MAX_ELEMS
    if small:
        conv_o_flat, lin_o_flat, emb_o_flat = _fused_small(
            packed["all"], conv_flat, lin_flat, emb_elems, packed["emb_dtype"]
        )
    else:
        # Unequal tensor sizes: per-tensor calls keep every grid step full-width.
        conv_o_flat = _affine_tiled(conv_flat, packed["conv"])
        lin_o_flat = _affine_tiled(lin_flat, packed["lin"])
        emb_o_flat = _fill_tiled(emb_elems, packed["emb"], packed["emb_dtype"])

    conv_out = conv_o_flat.reshape(conv_input.shape)
    lin_out = lin_o_flat.reshape(linear_input.shape)
    emb_out = emb_o_flat.reshape(embedding_input.shape + (1,))
    # TODO(synk): nn.Embedding raises on out-of-range indices; with vocab==1 every valid
    # index maps to row 0, so indices are intentionally never read or validated here.
    return [conv_out, {"linear": lin_out, "embedding": emb_out}]


if __name__ == "__main__":
    key = jax.random.PRNGKey(0)
    k_cw, k_cb, k_lw, k_lb, k_ew, k_ci, k_li = jax.random.split(key, 7)

    # Parameters match nn.Conv1d(1,1,1), nn.Linear(1,1), nn.Embedding(1,1).
    params = {
        "conv_w": jax.random.normal(k_cw, (1, 1, 1), jnp.float32),
        "conv_b": jax.random.normal(k_cb, (1,), jnp.float32),
        "lin_w": jax.random.normal(k_lw, (1, 1), jnp.float32),
        "lin_b": jax.random.normal(k_lb, (1,), jnp.float32),
        "emb_w": jax.random.normal(k_ew, (1, 1), jnp.float32),
    }
    packed = pack_params(params)  # once, outside the forward hot path

    # Small example inputs (fused single-block path).
    conv_input = jax.random.normal(k_ci, (2, 1, 16), jnp.float32)   # NCL
    linear_input = jax.random.normal(k_li, (2, 8, 1), jnp.float32)  # (..., 1)
    embedding_input = jnp.zeros((2, 8), dtype=jnp.int32)            # vocab==1 -> only idx 0

    out = model_forward(packed, conv_input, linear_input, embedding_input)
    jax.block_until_ready(out)

    # Pure-JAX reference check.
    ref_conv = conv_input * params["conv_w"][0, 0, 0] + params["conv_b"][0]
    ref_lin = linear_input * params["lin_w"][0, 0] + params["lin_b"][0]
    ref_emb = params["emb_w"][embedding_input]  # (2, 8, 1)
    assert out[0].shape == (2, 1, 16)
    assert out[1]["linear"].shape == (2, 8, 1)
    assert out[1]["embedding"].shape == (2, 8, 1)
    assert jnp.allclose(out[0], ref_conv, atol=1e-6)
    assert jnp.allclose(out[1]["linear"], ref_lin, atol=1e-6)
    assert jnp.allclose(out[1]["embedding"], ref_emb, atol=1e-6)

    # Also exercise the tiled (grid + lane-dense 512-wide blocks + "parallel") path.
    k_ci2, k_li2 = jax.random.split(k_ci, 2)
    conv_big = jax.random.normal(k_ci2, (4, 1, 4096), jnp.float32)
    lin_big = jax.random.normal(k_li2, (4, 512, 1), jnp.float32)
    emb_big = jnp.zeros((4, 512), dtype=jnp.int32)
    out_big = model_forward(packed, conv_big, lin_big, emb_big)
    jax.block_until_ready(out_big)
    assert jnp.allclose(
        out_big[0], conv_big * params["conv_w"][0, 0, 0] + params["conv_b"][0], atol=1e-6
    )
    assert jnp.allclose(
        out_big[1]["linear"], lin_big * params["lin_w"][0, 0] + params["lin_b"][0], atol=1e-6
    )
    assert jnp.allclose(out_big[1]["embedding"], params["emb_w"][emb_big], atol=1e-6)

    print("KERNEL_OK")
</pallas_src>

<mosaic_0001>
module attributes {stable_mosaic.version = 11 : i64} {
  func.func @_fused_kernel(%arg0: memref<5xf32, #tpu.memory_space<smem>>, %arg1: memref<1x128xf32, #tpu.memory_space<vmem>>, %arg2: memref<1x128xf32, #tpu.memory_space<vmem>>, %arg3: memref<1x128xf32, #tpu.memory_space<vmem>>, %arg4: memref<1x128xf32, #tpu.memory_space<vmem>>, %arg5: memref<1x128xf32, #tpu.memory_space<vmem>>) attributes {dimension_semantics = [], scalar_prefetch = 0 : i64, scratch_operands = 0 : i64, tpu.core_type = #tpu.core_type<tc>} {
    %c0 = arith.constant 0 : index
    %c0_0 = arith.constant 0 : index
    %0 = vector.load %arg1[%c0, %c0_0] : memref<1x128xf32, #tpu.memory_space<vmem>>, vector<1x128xf32>
    %c0_1 = arith.constant 0 : index
    %1 = memref.load %arg0[%c0_1] : memref<5xf32, #tpu.memory_space<smem>>
    %2 = vector.broadcast %1 : f32 to vector<1x128xf32>
    %3 = arith.mulf %0, %2 : vector<1x128xf32>
    %c1 = arith.constant 1 : index
    %4 = memref.load %arg0[%c1] : memref<5xf32, #tpu.memory_space<smem>>
    %5 = vector.broadcast %4 : f32 to vector<1x128xf32>
    %6 = arith.addf %3, %5 : vector<1x128xf32>
    %c0_2 = arith.constant 0 : index
    %c0_3 = arith.constant 0 : index
    %7 = vector.load %arg3[%c0_2, %c0_3] : memref<1x128xf32, #tpu.memory_space<vmem>>, vector<1x128xf32>
    tpu.vector_store %arg3[%c0_2, %c0_3], %6 {strides = array<i32>} : memref<1x128xf32, #tpu.memory_space<vmem>>, vector<1x128xf32>,
    %c0_4 = arith.constant 0 : index
    %c0_5 = arith.constant 0 : index
    %8 = vector.load %arg2[%c0_4, %c0_5] : memref<1x128xf32, #tpu.memory_space<vmem>>, vector<1x128xf32>
    %c2 = arith.constant 2 : index
    %9 = memref.load %arg0[%c2] : memref<5xf32, #tpu.memory_space<smem>>
    %10 = vector.broadcast %9 : f32 to vector<1x128xf32>
    %11 = arith.mulf %8, %10 : vector<1x128xf32>
    %c3 = arith.constant 3 : index
    %12 = memref.load %arg0[%c3] : memref<5xf32, #tpu.memory_space<smem>>
    %13 = vector.broadcast %12 : f32 to vector<1x128xf32>
    %14 = arith.addf %11, %13 : vector<1x128xf32>
    %c0_6 = arith.constant 0 : index
    %c0_7 = arith.constant 0 : index
    %15 = vector.load %arg4[%c0_6, %c0_7] : memref<1x128xf32, #tpu.memory_space<vmem>>, vector<1x128xf32>
    tpu.vector_store %arg4[%c0_6, %c0_7], %14 {strides = array<i32>} : memref<1x128xf32, #tpu.memory_space<vmem>>, vector<1x128xf32>,
    %c4 = arith.constant 4 : index
    %16 = memref.load %arg0[%c4] : memref<5xf32, #tpu.memory_space<smem>>
    %17 = vector.broadcast %16 : f32 to vector<1x128xf32>
    %c0_8 = arith.constant 0 : index
    %c0_9 = arith.constant 0 : index
    %18 = vector.load %arg5[%c0_8, %c0_9] : memref<1x128xf32, #tpu.memory_space<vmem>>, vector<1x128xf32>
    tpu.vector_store %arg5[%c0_8, %c0_9], %17 {strides = array<i32>} : memref<1x128xf32, #tpu.memory_space<vmem>>, vector<1x128xf32>,
    return
  }
}

</mosaic_0001>

<llo_original>
// kernel: tpu_custom_call.1
$region0: #{tpu_custom_call.1}
  #allocation0 [shape = 'u32[]', space=smem, size = 0x4, offset = 0x4, fixed_abs, tag = 'smem constant byte address 0x4 - core index']
  #allocation1 [shape = 'u32[144,128]{1,0:T(1,128)}', space=vmem, size = 0x12000, scoped, tag = 'internal scratch']
  %s0 = inlined_call_operand.hbm [shape: f32[5], index: 0, kind: input, shape index: {}]
  %s1 = inlined_call_operand.vmem [shape: f32[1,128], index: 1, kind: input, shape index: {}]
  %s2 = inlined_call_operand.vmem [shape: f32[1,128], index: 2, kind: input, shape index: {}]
  %s3 = inlined_call_operand.hbm [shape: f32[1,128], index: 3, kind: output, shape index: {0}]
  %s4 = inlined_call_operand.hbm [shape: f32[1,128], index: 4, kind: output, shape index: {1}]
  %s5 = inlined_call_operand.hbm [shape: f32[1,128], index: 5, kind: output, shape index: {2}]
  %6 = xla_tuple %s3, %s4, %s5
  %s7 = sld [smem:[#allocation0]]
  $region42: #{tpu_custom_call.1} parent=0
    _
  %s9 = ssub.s32 1, %s7
  %s10 = scalar_select 0, %s9, %s7
  $region1: #{tpu_custom_call.1} parent=0
    #allocation2 [shape = 'u8[512]{0}', space=smem, size = 0x200, scoped, tag = 'input window, operand 0, single buffered']
    #allocation3 [shape = 's32[1]{0}', space=sflag, size = 0x4, scoped, tag = 'scoped memory for tpu_custom_call.1']
    #allocation4 [shape = 's32[1]{0}', space=sflag, size = 0x4, scoped, tag = 'scoped memory for tpu_custom_call.1']
    #allocation5 [shape = 'u8[512]{0}', space=vmem, size = 0x400, scoped, tag = 'output window, operand 0, single buffered']
    #allocation6 [shape = 'u8[512]{0}', space=vmem, size = 0x400, scoped, tag = 'output window, operand 1, single buffered']
    #allocation7 [shape = 's32[1]{0}', space=sflag, size = 0x4, scoped, tag = 'scoped memory for tpu_custom_call.1']
    #allocation8 [shape = 'u8[512]{0}', space=vmem, size = 0x400, scoped, tag = 'output window, operand 2, single buffered']
    %11 = vsyncpa [#allocation4], 0
    %12 = vsyncpa [#allocation3], 0
    %13 = vsyncpa [#allocation7], 0
    // Predicated region
    $region2: #{tpu_custom_call.1} parent=1 // pred_check
      _
    $region3: #{tpu_custom_call.1} parent=1 // pred_check_branch
      %15 = sbr.rel (0) target = $region5
    $region4: #{tpu_custom_call.1} parent=1 // pred_region
      %s17 = ssub.s32 16, 16
      %18 = vsyncadd [#allocation4], %s17
      %21 = dma.hbm_to_smem %s0, 16, [#allocation2], [#allocation4]
    $region5: #{tpu_custom_call.1} parent=1 // pred_fallthru
      _
    // Predicated region
    $region6: #{tpu_custom_call.1} parent=1 // pred_check
      _
    $region7: #{tpu_custom_call.1} parent=1 // pred_check_branch
      %23 = sbr.rel (0) target = $region9
    $region8: #{tpu_custom_call.1} parent=1 // pred_region
      _
    $region9: #{tpu_custom_call.1} parent=1 // pred_fallthru
      _
    // Predicated region
    $region10: #{tpu_custom_call.1} parent=1 // pred_check
      _
    $region11: #{tpu_custom_call.1} parent=1 // pred_check_branch
      %25 = sbr.rel (0) target = $region13
    $region12: #{tpu_custom_call.1} parent=1 // pred_region
      _
    $region13: #{tpu_custom_call.1} parent=1 // pred_fallthru
      _
    // Predicated region
    $region14: #{tpu_custom_call.1} parent=1 // pred_check
      _
    $region15: #{tpu_custom_call.1} parent=1 // pred_check_branch
      %27 = sbr.rel (0) target = $region17
    $region16: #{tpu_custom_call.1} parent=1 // pred_region
      %28 = dma.done [#allocation4], 16
    $region17: #{tpu_custom_call.1} parent=1 // pred_fallthru
      _
    %29 = sfence
    %v30 = vld [vmem:[%s1] sm:$0x1]
    %s31 = sld [smem:[#allocation2]]
    %v32 = vstv %s31
    %v33 = vmul.f32 %v30, %v32
    %s34 = sld [smem:[#allocation2 + $0x1]]
    %v35 = vstv %s34
    %v36 = vadd.f32 %v33, %v35
    %37 = vst [vmem:[#allocation5] sm:$0x1] %v36
    %v38 = vld [vmem:[%s2] sm:$0x1]
    %s39 = sld [smem:[#allocation2 + $0x2]]
    %v40 = vstv %s39
    %v41 = vmul.f32 %v38, %v40
    %s42 = sld [smem:[#allocation2 + $0x3]]
    %v43 = vstv %s42
    %v44 = vadd.f32 %v41, %v43
    %45 = vst [vmem:[#allocation6] sm:$0x1] %v44
    %s46 = sld [smem:[#allocation2 + $0x4]]
    %v47 = vstv %s46
    %48 = vst [vmem:[#allocation8] sm:$0x1] %v47
    // Predicated region
    $region18: #{tpu_custom_call.1} parent=1 // pred_check
      _
    $region19: #{tpu_custom_call.1} parent=1 // pred_check_branch
      %50 = sbr.rel (0) target = $region21
    $region20: #{tpu_custom_call.1} parent=1 // pred_region
      %s52 = ssub.s32 16, 16
      %53 = vsyncadd [#allocation3], %s52
      %s55 = sshll.u32 [#allocation5], 4
      %s56 = int_to_ptr.vmem [resolvable:$true] %s55
      %58 = dma.vmem_to_hbm [thread:$0]  %s56, 16, %s3, [#allocation3]
    $region21: #{tpu_custom_call.1} parent=1 // pred_fallthru
      _
    // Predicated region
    $region22: #{tpu_custom_call.1} parent=1 // pred_check
      _
    $region23: #{tpu_custom_call.1} parent=1 // pred_check_branch
      %60 = sbr.rel (0) target = $region25
    $region24: #{tpu_custom_call.1} parent=1 // pred_region
      %s62 = ssub.s32 16, 16
      %63 = vsyncadd [#allocation7], %s62
      %s65 = sshll.u32 [#allocation6], 4
      %s66 = int_to_ptr.vmem [resolvable:$true] %s65
      %68 = dma.vmem_to_hbm [thread:$0]  %s66, 16, %s4, [#allocation7]
    $region25: #{tpu_custom_call.1} parent=1 // pred_fallthru
      _
    // Predicated region
    $region26: #{tpu_custom_call.1} parent=1 // pred_check
      _
    $region27: #{tpu_custom_call.1} parent=1 // pred_check_branch
      %70 = sbr.rel (0) target = $region29
    $region28: #{tpu_custom_call.1} parent=1 // pred_region
      %s72 = ssub.s32 16, 16
      %73 = vsyncadd [#allocation7], %s72
      %s75 = sshll.u32 [#allocation8], 4
      %s76 = int_to_ptr.vmem [resolvable:$true] %s75
      %78 = dma.vmem_to_hbm [thread:$0]  %s76, 16, %s5, [#allocation7]
    $region29: #{tpu_custom_call.1} parent=1 // pred_fallthru
      _
    // Predicated region
    $region30: #{tpu_custom_call.1} parent=1 // pred_check
      _
    $region31: #{tpu_custom_call.1} parent=1 // pred_check_branch
      %80 = sbr.rel (0) target = $region33
    $region32: #{tpu_custom_call.1} parent=1 // pred_region
      %81 = dma.done [#allocation3], 16
    $region33: #{tpu_custom_call.1} parent=1 // pred_fallthru
      _
    // Predicated region
    $region34: #{tpu_custom_call.1} parent=1 // pred_check
      _
    $region35: #{tpu_custom_call.1} parent=1 // pred_check_branch
      %83 = sbr.rel (0) target = $region37
    $region36: #{tpu_custom_call.1} parent=1 // pred_region
      %84 = dma.done [#allocation7], 16
    $region37: #{tpu_custom_call.1} parent=1 // pred_fallthru
      _
    // Predicated region
    $region38: #{tpu_custom_call.1} parent=1 // pred_check
      _
    $region39: #{tpu_custom_call.1} parent=1 // pred_check_branch
      %86 = sbr.rel (0) target = $region41
    $region40: #{tpu_custom_call.1} parent=1 // pred_region
      %87 = dma.done [#allocation7], 16
    $region41: #{tpu_custom_call.1} parent=1 // pred_fallthru
      _
    %88 = vsyncpa [#allocation3], 1
    %89 = vsyncpa [#allocation7], 1
    %90 = vsyncpa [#allocation4], 1

</llo_original>
